<compile_context>
chip_gen: v6e
topology: v6e:2x2x1
jax: 0.10.0
libtpu: 0.0.40
codegen_flags: <defaults>
</compile_context>

<pallas_src>
import functools

import jax
import jax.numpy as jnp
import numpy as np
from jax.experimental import pallas as pl
from jax.experimental.pallas import tpu as pltpu


def refinement_kernel(vhk_ref, maskw_ref, v_ref,
                      w1_ref, b1_ref, w2_ref, b2_ref,
                      gamma_ref, beta_ref,
                      out_ref,
                      acc_ref):
    """One grid step processes T rows of the flattened (B*N) axis.

    vhk_ref  : (T, K*2H)  input dtype   neighbor features; neighbor k lives in
                                        lanes [k*2H, (k+1)*2H)
    maskw_ref: (T, K)     f32           validity mask pre-scaled by 1/K
    v_ref    : (T, H)                   node features
    acc_ref  : (T, H)     f32 VMEM      accumulator for sum_k (m_k/K)*ReLU(h1_k)
    """
    T, KH2 = vhk_ref.shape
    K = maskw_ref.shape[-1]
    H = v_ref.shape[-1]
    H2 = KH2 // K
    cdt = w1_ref.dtype              # compute dtype of mm1/mm2 (bf16 or f32)

    mask = maskw_ref[...]           # (T, K) f32, loaded once
    w1 = w1_ref[...]                # (2H, H)
    b1 = b1_ref[...]                # (1, H) f32

    # ---- message MLP stage 1, masked-mean folded in (linearity of mm2) ------
    # acc = sum_k (mask_k / K) * ReLU(VH_K[:,k,:] @ W1 + b1)
    acc_ref[...] = jnp.zeros_like(acc_ref)
    for k in range(K):                              # K is small & static
        xk = vhk_ref[:, k * H2:(k + 1) * H2].astype(cdt)      # (T, 2H)
        h1k = jnp.dot(xk, w1, preferred_element_type=jnp.float32) + b1
        h1k = jnp.maximum(h1k, 0.0)                            # ReLU
        acc_ref[...] += h1k * mask[:, k:k + 1]                 # (T, H)

    # ---- message MLP stage 2 on the reduced (T, H) activations --------------
    # mes_mean = acc @ W2 + b2 * sum_k(mask_k / K)
    msum = jnp.sum(mask, axis=-1, keepdims=True)               # (T, 1)
    mes = jnp.dot(acc_ref[...].astype(w2_ref.dtype), w2_ref[...],
                  preferred_element_type=jnp.float32)
    mes = mes + b2_ref[...] * msum                             # (T, H)

    # ---- residual + LayerNorm ------------------------------------------------
    y = v_ref[...].astype(jnp.float32) + mes
    mu = jnp.mean(y, axis=-1, keepdims=True)
    var = jnp.mean((y - mu) ** 2, axis=-1, keepdims=True)
    y_hat = (y - mu) * jax.lax.rsqrt(var + 1e-5)
    out_ref[...] = (y_hat * gamma_ref[...] + beta_ref[...]).astype(out_ref.dtype)


@functools.partial(jax.jit,
                   static_argnames=("block_rows", "compute_dtype", "out_dtype"))
def refinement_forward(V, VH_K, Vmask, params, *, block_rows=512,
                       compute_dtype=jnp.bfloat16, out_dtype=None):
    """Pallas forward.

    block_rows   : rows of the flattened (B*N) axis per grid step (sweep
                   256..1024; clamped to B*N; non-divisible B*N is padded).
    compute_dtype: dtype of the matmul operands (bf16 default; jnp.float32 for
                   exact f32 semantics).  The cast happens in-register in the
                   kernel — the VH_K HBM stream stays in its input dtype.
    out_dtype    : output dtype (default V.dtype; pass jnp.bfloat16 to halve
                   output HBM traffic if downstream tolerates it).
    """
    B, N, H = V.shape
    K = VH_K.shape[2]
    H2 = VH_K.shape[3]
    assert H2 == 2 * H
    BN = B * N
    out_dtype = V.dtype if out_dtype is None else out_dtype

    T = min(block_rows, BN)
    G = pl.cdiv(BN, T)
    BNp = G * T

    # Metadata-only (contiguous) reshapes — no cast / transpose of the dominant
    # VH_K stream in the wrapper.  Neighbor k of node t sits in lanes
    # [k*2H, (k+1)*2H) of row t.
    vhk = VH_K.reshape(BN, K * H2)
    # Dense (BN, K) mask with 1/K folded in -> in-kernel weighted sum replaces
    # mask-multiply + mean and avoids a lane-1 (T, K, 1) block.
    maskw = Vmask.reshape(BN, K).astype(jnp.float32) * (1.0 / K)
    v = V.reshape(BN, H)

    if BNp != BN:                      # tail handling: zero-pad, slice after
        pad = BNp - BN
        vhk = jnp.pad(vhk, ((0, pad), (0, 0)))
        maskw = jnp.pad(maskw, ((0, pad), (0, 0)))
        v = jnp.pad(v, ((0, pad), (0, 0)))

    w1 = params["w1"].astype(compute_dtype)                  # (2H, H)
    b1 = params["b1"].reshape(1, H).astype(jnp.float32)
    w2 = params["w2"].astype(compute_dtype)                  # (H, H)
    b2 = params["b2"].reshape(1, H).astype(jnp.float32)
    gamma = params["gamma"].reshape(1, H).astype(jnp.float32)
    beta = params["beta"].reshape(1, H).astype(jnp.float32)

    out = pl.pallas_call(
        refinement_kernel,
        out_shape=jax.ShapeDtypeStruct((BNp, H), out_dtype),
        grid_spec=pltpu.PrefetchScalarGridSpec(
            num_scalar_prefetch=0,
            grid=(G,),
            in_specs=[
                pl.BlockSpec((T, K * H2), lambda i: (i, 0)),   # VH_K tile
                pl.BlockSpec((T, K), lambda i: (i, 0)),        # mask/K tile
                pl.BlockSpec((T, H), lambda i: (i, 0)),        # V tile
                pl.BlockSpec((H2, H), lambda i: (0, 0)),       # W1 (resident)
                pl.BlockSpec((1, H), lambda i: (0, 0)),        # b1
                pl.BlockSpec((H, H), lambda i: (0, 0)),        # W2
                pl.BlockSpec((1, H), lambda i: (0, 0)),        # b2
                pl.BlockSpec((1, H), lambda i: (0, 0)),        # gamma
                pl.BlockSpec((1, H), lambda i: (0, 0)),        # beta
            ],
            out_specs=pl.BlockSpec((T, H), lambda i: (i, 0)),
            scratch_shapes=[pltpu.VMEM((T, H), jnp.float32)],
        ),
        compiler_params=pltpu.CompilerParams(
            dimension_semantics=("parallel",),
            vmem_limit_bytes=64 * 1024 * 1024),
    )(vhk, maskw, v, w1, b1, w2, b2, gamma, beta)

    if BNp != BN:
        out = out[:BN]
    return out.reshape(B, N, H)


def reference_forward(V, VH_K, Vmask, params):
    """Pure-JAX reference mirroring the PyTorch forward (eval mode, f32)."""
    h1 = jnp.maximum(VH_K @ params["w1"] + params["b1"], 0.0)
    message = (h1 @ params["w2"] + params["b2"]) * Vmask
    mes_mean = jnp.mean(message, axis=-2)
    y = V + mes_mean
    mu = jnp.mean(y, axis=-1, keepdims=True)
    var = jnp.mean((y - mu) ** 2, axis=-1, keepdims=True)
    return (y - mu) * jax.lax.rsqrt(var + 1e-5) * params["gamma"] + params["beta"]


def init_params(key, hidden_size):
    H = hidden_size
    k1, k2, k3, k4 = jax.random.split(key, 4)
    lim1 = 1.0 / np.sqrt(2 * H)
    lim2 = 1.0 / np.sqrt(H)
    return {
        "w1": jax.random.uniform(k1, (2 * H, H), jnp.float32, -lim1, lim1),
        "b1": jax.random.uniform(k2, (H,), jnp.float32, -lim1, lim1),
        "w2": jax.random.uniform(k3, (H, H), jnp.float32, -lim2, lim2),
        "b2": jax.random.uniform(k4, (H,), jnp.float32, -lim2, lim2),
        "gamma": jnp.ones((H,), jnp.float32),
        "beta": jnp.zeros((H,), jnp.float32),
    }


if __name__ == "__main__":
    B, N, K, H = 2, 8, 8, 32   # batch, nodes, neighbors, hidden_size

    key = jax.random.PRNGKey(0)
    kp, kv, kvhk, km = jax.random.split(key, 4)

    params = init_params(kp, H)
    V = jax.random.normal(kv, (B, N, H), jnp.float32)
    VH_K = jax.random.normal(kvhk, (B, N, K, 2 * H), jnp.float32)
    Vmask = (jax.random.uniform(km, (B, N, K, 1)) > 0.3).astype(jnp.float32)

    ref = reference_forward(V, VH_K, Vmask, params)

    # 1) Exact-f32 compute path vs. the unquantized reference (tight-ish
    #    tolerance; residual differences are accumulation order / TPU matmul
    #    precision defaults).
    out_f32 = refinement_forward(V, VH_K, Vmask, params,
                                 compute_dtype=jnp.float32)
    out_f32 = jax.block_until_ready(out_f32)
    np.testing.assert_allclose(np.asarray(out_f32), np.asarray(ref),
                               rtol=5e-3, atol=5e-3)

    # 2) Default bf16-matmul path vs. the same unquantized reference (looser
    #    tolerance for bf16 operand rounding).
    out_bf16 = refinement_forward(V, VH_K, Vmask, params)   # block_rows clamps
    out_bf16 = jax.block_until_ready(out_bf16)
    np.testing.assert_allclose(np.asarray(out_bf16), np.asarray(ref),
                               rtol=2e-2, atol=2e-2)

    print("KERNEL_OK")
</pallas_src>

<mosaic_0001>
module attributes {stable_mosaic.version = 11 : i64} {
  func.func @refinement_kernel(%arg0: i32, %arg1: memref<16x512xf32, #tpu.memory_space<vmem>>, %arg2: memref<16x8xf32, #tpu.memory_space<vmem>>, %arg3: memref<16x32xf32, #tpu.memory_space<vmem>>, %arg4: memref<64x32xf32, #tpu.memory_space<vmem>>, %arg5: memref<1x32xf32, #tpu.memory_space<vmem>>, %arg6: memref<32x32xf32, #tpu.memory_space<vmem>>, %arg7: memref<1x32xf32, #tpu.memory_space<vmem>>, %arg8: memref<1x32xf32, #tpu.memory_space<vmem>>, %arg9: memref<1x32xf32, #tpu.memory_space<vmem>>, %arg10: memref<16x32xf32, #tpu.memory_space<vmem>>, %arg11: memref<16x32xf32, #tpu.memory_space<vmem>>) attributes {dimension_semantics = [#tpu.dimension_semantics<parallel>], iteration_bounds = array<i64: 1>, scalar_prefetch = 0 : i64, scratch_operands = 1 : i64, tpu.core_type = #tpu.core_type<tc>, window_params = [{transform_indices = @transform_0, window_bounds = array<i64: 16, 512>}, {transform_indices = @transform_1, window_bounds = array<i64: 16, 8>}, {transform_indices = @transform_2, window_bounds = array<i64: 16, 32>}, {pipeline_mode = #tpu.pipeline_mode<synchronous>, transform_indices = @transform_3, window_bounds = array<i64: 64, 32>}, {pipeline_mode = #tpu.pipeline_mode<synchronous>, transform_indices = @transform_4, window_bounds = array<i64: 1, 32>}, {pipeline_mode = #tpu.pipeline_mode<synchronous>, transform_indices = @transform_5, window_bounds = array<i64: 32, 32>}, {pipeline_mode = #tpu.pipeline_mode<synchronous>, transform_indices = @transform_6, window_bounds = array<i64: 1, 32>}, {pipeline_mode = #tpu.pipeline_mode<synchronous>, transform_indices = @transform_7, window_bounds = array<i64: 1, 32>}, {pipeline_mode = #tpu.pipeline_mode<synchronous>, transform_indices = @transform_8, window_bounds = array<i64: 1, 32>}, {transform_indices = @transform_9, window_bounds = array<i64: 16, 32>}]} {
    %c0 = arith.constant 0 : index
    %c0_0 = arith.constant 0 : index
    %0 = vector.load %arg2[%c0, %c0_0] : memref<16x8xf32, #tpu.memory_space<vmem>>, vector<16x8xf32>
    %c0_1 = arith.constant 0 : index
    %c0_2 = arith.constant 0 : index
    %1 = vector.load %arg4[%c0_1, %c0_2] : memref<64x32xf32, #tpu.memory_space<vmem>>, vector<64x32xf32>
    %c0_3 = arith.constant 0 : index
    %c0_4 = arith.constant 0 : index
    %2 = vector.load %arg5[%c0_3, %c0_4] : memref<1x32xf32, #tpu.memory_space<vmem>>, vector<1x32xf32>
    %cst = arith.constant 0.000000e+00 : f32
    %3 = vector.broadcast %cst : f32 to vector<16x32xf32>
    %c0_5 = arith.constant 0 : index
    %c0_6 = arith.constant 0 : index
    %4 = vector.load %arg11[%c0_5, %c0_6] : memref<16x32xf32, #tpu.memory_space<vmem>>, vector<16x32xf32>
    tpu.vector_store %arg11[%c0_5, %c0_6], %3 {strides = array<i32>} : memref<16x32xf32, #tpu.memory_space<vmem>>, vector<16x32xf32>,
    %c0_7 = arith.constant 0 : index
    %c0_8 = arith.constant 0 : index
    %5 = vector.load %arg1[%c0_7, %c0_8] : memref<16x512xf32, #tpu.memory_space<vmem>>, vector<16x64xf32>
    %cst_9 = arith.constant dense<0.000000e+00> : vector<16x32xf32>
    %6 = tpu.matmul %5, %1, %cst_9 {dimension_numbers = #tpu.dot_dimension_numbers<[1], [0], [0], [1], [0, 0, 1, 1], [], []>} : vector<16x64xf32>, vector<64x32xf32>, vector<16x32xf32> -> vector<16x32xf32>
    %7 = vector.broadcast %2 : vector<1x32xf32> to vector<16x32xf32>
    %8 = arith.addf %6, %7 : vector<16x32xf32>
    %cst_10 = arith.constant 0.000000e+00 : f32
    %9 = vector.broadcast %cst_10 : f32 to vector<16x32xf32>
    %10 = arith.maximumf %8, %9 : vector<16x32xf32>
    %c0_11 = arith.constant 0 : index
    %c0_12 = arith.constant 0 : index
    %11 = vector.load %arg11[%c0_11, %c0_12] : memref<16x32xf32, #tpu.memory_space<vmem>>, vector<16x32xf32>
    %12 = vector.extract_strided_slice %0 {offsets = [0, 0], sizes = [16, 1], strides = [1, 1]} : vector<16x8xf32> to vector<16x1xf32>
    %13 = vector.broadcast %12 : vector<16x1xf32> to vector<16x32xf32>
    %14 = arith.mulf %10, %13 : vector<16x32xf32>
    %15 = arith.addf %11, %14 : vector<16x32xf32>
    %c0_13 = arith.constant 0 : index
    %c0_14 = arith.constant 0 : index
    %16 = vector.load %arg11[%c0_13, %c0_14] : memref<16x32xf32, #tpu.memory_space<vmem>>, vector<16x32xf32>
    tpu.vector_store %arg11[%c0_13, %c0_14], %15 {strides = array<i32>} : memref<16x32xf32, #tpu.memory_space<vmem>>, vector<16x32xf32>,
    %c0_15 = arith.constant 0 : index
    %c64 = arith.constant 64 : index
    %17 = vector.load %arg1[%c0_15, %c64] : memref<16x512xf32, #tpu.memory_space<vmem>>, vector<16x64xf32>
    %cst_16 = arith.constant dense<0.000000e+00> : vector<16x32xf32>
    %18 = tpu.matmul %17, %1, %cst_16 {dimension_numbers = #tpu.dot_dimension_numbers<[1], [0], [0], [1], [0, 0, 1, 1], [], []>} : vector<16x64xf32>, vector<64x32xf32>, vector<16x32xf32> -> vector<16x32xf32>
    %19 = vector.broadcast %2 : vector<1x32xf32> to vector<16x32xf32>
    %20 = arith.addf %18, %19 : vector<16x32xf32>
    %cst_17 = arith.constant 0.000000e+00 : f32
    %21 = vector.broadcast %cst_17 : f32 to vector<16x32xf32>
    %22 = arith.maximumf %20, %21 : vector<16x32xf32>
    %c0_18 = arith.constant 0 : index
    %c0_19 = arith.constant 0 : index
    %23 = vector.load %arg11[%c0_18, %c0_19] : memref<16x32xf32, #tpu.memory_space<vmem>>, vector<16x32xf32>
    %24 = vector.extract_strided_slice %0 {offsets = [0, 1], sizes = [16, 1], strides = [1, 1]} : vector<16x8xf32> to vector<16x1xf32>
    %25 = vector.broadcast %24 : vector<16x1xf32> to vector<16x32xf32>
    %26 = arith.mulf %22, %25 : vector<16x32xf32>
    %27 = arith.addf %23, %26 : vector<16x32xf32>
    %c0_20 = arith.constant 0 : index
    %c0_21 = arith.constant 0 : index
    %28 = vector.load %arg11[%c0_20, %c0_21] : memref<16x32xf32, #tpu.memory_space<vmem>>, vector<16x32xf32>
    tpu.vector_store %arg11[%c0_20, %c0_21], %27 {strides = array<i32>} : memref<16x32xf32, #tpu.memory_space<vmem>>, vector<16x32xf32>,
    %c0_22 = arith.constant 0 : index
    %c128 = arith.constant 128 : index
    %29 = vector.load %arg1[%c0_22, %c128] : memref<16x512xf32, #tpu.memory_space<vmem>>, vector<16x64xf32>
    %cst_23 = arith.constant dense<0.000000e+00> : vector<16x32xf32>
    %30 = tpu.matmul %29, %1, %cst_23 {dimension_numbers = #tpu.dot_dimension_numbers<[1], [0], [0], [1], [0, 0, 1, 1], [], []>} : vector<16x64xf32>, vector<64x32xf32>, vector<16x32xf32> -> vector<16x32xf32>
    %31 = vector.broadcast %2 : vector<1x32xf32> to vector<16x32xf32>
    %32 = arith.addf %30, %31 : vector<16x32xf32>
    %cst_24 = arith.constant 0.000000e+00 : f32
    %33 = vector.broadcast %cst_24 : f32 to vector<16x32xf32>
    %34 = arith.maximumf %32, %33 : vector<16x32xf32>
    %c0_25 = arith.constant 0 : index
    %c0_26 = arith.constant 0 : index
    %35 = vector.load %arg11[%c0_25, %c0_26] : memref<16x32xf32, #tpu.memory_space<vmem>>, vector<16x32xf32>
    %36 = vector.extract_strided_slice %0 {offsets = [0, 2], sizes = [16, 1], strides = [1, 1]} : vector<16x8xf32> to vector<16x1xf32>
    %37 = vector.broadcast %36 : vector<16x1xf32> to vector<16x32xf32>
    %38 = arith.mulf %34, %37 : vector<16x32xf32>
    %39 = arith.addf %35, %38 : vector<16x32xf32>
    %c0_27 = arith.constant 0 : index
    %c0_28 = arith.constant 0 : index
    %40 = vector.load %arg11[%c0_27, %c0_28] : memref<16x32xf32, #tpu.memory_space<vmem>>, vector<16x32xf32>
    tpu.vector_store %arg11[%c0_27, %c0_28], %39 {strides = array<i32>} : memref<16x32xf32, #tpu.memory_space<vmem>>, vector<16x32xf32>,
    %c0_29 = arith.constant 0 : index
    %c192 = arith.constant 192 : index
    %41 = vector.load %arg1[%c0_29, %c192] : memref<16x512xf32, #tpu.memory_space<vmem>>, vector<16x64xf32>
    %cst_30 = arith.constant dense<0.000000e+00> : vector<16x32xf32>
    %42 = tpu.matmul %41, %1, %cst_30 {dimension_numbers = #tpu.dot_dimension_numbers<[1], [0], [0], [1], [0, 0, 1, 1], [], []>} : vector<16x64xf32>, vector<64x32xf32>, vector<16x32xf32> -> vector<16x32xf32>
    %43 = vector.broadcast %2 : vector<1x32xf32> to vector<16x32xf32>
    %44 = arith.addf %42, %43 : vector<16x32xf32>
    %cst_31 = arith.constant 0.000000e+00 : f32
    %45 = vector.broadcast %cst_31 : f32 to vector<16x32xf32>
    %46 = arith.maximumf %44, %45 : vector<16x32xf32>
    %c0_32 = arith.constant 0 : index
    %c0_33 = arith.constant 0 : index
    %47 = vector.load %arg11[%c0_32, %c0_33] : memref<16x32xf32, #tpu.memory_space<vmem>>, vector<16x32xf32>
    %48 = vector.extract_strided_slice %0 {offsets = [0, 3], sizes = [16, 1], strides = [1, 1]} : vector<16x8xf32> to vector<16x1xf32>
    %49 = vector.broadcast %48 : vector<16x1xf32> to vector<16x32xf32>
    %50 = arith.mulf %46, %49 : vector<16x32xf32>
    %51 = arith.addf %47, %50 : vector<16x32xf32>
    %c0_34 = arith.constant 0 : index
    %c0_35 = arith.constant 0 : index
    %52 = vector.load %arg11[%c0_34, %c0_35] : memref<16x32xf32, #tpu.memory_space<vmem>>, vector<16x32xf32>
    tpu.vector_store %arg11[%c0_34, %c0_35], %51 {strides = array<i32>} : memref<16x32xf32, #tpu.memory_space<vmem>>, vector<16x32xf32>,
    %c0_36 = arith.constant 0 : index
    %c256 = arith.constant 256 : index
    %53 = vector.load %arg1[%c0_36, %c256] : memref<16x512xf32, #tpu.memory_space<vmem>>, vector<16x64xf32>
    %cst_37 = arith.constant dense<0.000000e+00> : vector<16x32xf32>
    %54 = tpu.matmul %53, %1, %cst_37 {dimension_numbers = #tpu.dot_dimension_numbers<[1], [0], [0], [1], [0, 0, 1, 1], [], []>} : vector<16x64xf32>, vector<64x32xf32>, vector<16x32xf32> -> vector<16x32xf32>
    %55 = vector.broadcast %2 : vector<1x32xf32> to vector<16x32xf32>
    %56 = arith.addf %54, %55 : vector<16x32xf32>
    %cst_38 = arith.constant 0.000000e+00 : f32
    %57 = vector.broadcast %cst_38 : f32 to vector<16x32xf32>
    %58 = arith.maximumf %56, %57 : vector<16x32xf32>
    %c0_39 = arith.constant 0 : index
    %c0_40 = arith.constant 0 : index
    %59 = vector.load %arg11[%c0_39, %c0_40] : memref<16x32xf32, #tpu.memory_space<vmem>>, vector<16x32xf32>
    %60 = vector.extract_strided_slice %0 {offsets = [0, 4], sizes = [16, 1], strides = [1, 1]} : vector<16x8xf32> to vector<16x1xf32>
    %61 = vector.broadcast %60 : vector<16x1xf32> to vector<16x32xf32>
    %62 = arith.mulf %58, %61 : vector<16x32xf32>
    %63 = arith.addf %59, %62 : vector<16x32xf32>
    %c0_41 = arith.constant 0 : index
    %c0_42 = arith.constant 0 : index
    %64 = vector.load %arg11[%c0_41, %c0_42] : memref<16x32xf32, #tpu.memory_space<vmem>>, vector<16x32xf32>
    tpu.vector_store %arg11[%c0_41, %c0_42], %63 {strides = array<i32>} : memref<16x32xf32, #tpu.memory_space<vmem>>, vector<16x32xf32>,
    %c0_43 = arith.constant 0 : index
    %c320 = arith.constant 320 : index
    %65 = vector.load %arg1[%c0_43, %c320] : memref<16x512xf32, #tpu.memory_space<vmem>>, vector<16x64xf32>
    %cst_44 = arith.constant dense<0.000000e+00> : vector<16x32xf32>
    %66 = tpu.matmul %65, %1, %cst_44 {dimension_numbers = #tpu.dot_dimension_numbers<[1], [0], [0], [1], [0, 0, 1, 1], [], []>} : vector<16x64xf32>, vector<64x32xf32>, vector<16x32xf32> -> vector<16x32xf32>
    %67 = vector.broadcast %2 : vector<1x32xf32> to vector<16x32xf32>
    %68 = arith.addf %66, %67 : vector<16x32xf32>
    %cst_45 = arith.constant 0.000000e+00 : f32
    %69 = vector.broadcast %cst_45 : f32 to vector<16x32xf32>
    %70 = arith.maximumf %68, %69 : vector<16x32xf32>
    %c0_46 = arith.constant 0 : index
    %c0_47 = arith.constant 0 : index
    %71 = vector.load %arg11[%c0_46, %c0_47] : memref<16x32xf32, #tpu.memory_space<vmem>>, vector<16x32xf32>
    %72 = vector.extract_strided_slice %0 {offsets = [0, 5], sizes = [16, 1], strides = [1, 1]} : vector<16x8xf32> to vector<16x1xf32>
    %73 = vector.broadcast %72 : vector<16x1xf32> to vector<16x32xf32>
    %74 = arith.mulf %70, %73 : vector<16x32xf32>
    %75 = arith.addf %71, %74 : vector<16x32xf32>
    %c0_48 = arith.constant 0 : index
    %c0_49 = arith.constant 0 : index
    %76 = vector.load %arg11[%c0_48, %c0_49] : memref<16x32xf32, #tpu.memory_space<vmem>>, vector<16x32xf32>
    tpu.vector_store %arg11[%c0_48, %c0_49], %75 {strides = array<i32>} : memref<16x32xf32, #tpu.memory_space<vmem>>, vector<16x32xf32>,
    %c0_50 = arith.constant 0 : index
    %c384 = arith.constant 384 : index
    %77 = vector.load %arg1[%c0_50, %c384] : memref<16x512xf32, #tpu.memory_space<vmem>>, vector<16x64xf32>
    %cst_51 = arith.constant dense<0.000000e+00> : vector<16x32xf32>
    %78 = tpu.matmul %77, %1, %cst_51 {dimension_numbers = #tpu.dot_dimension_numbers<[1], [0], [0], [1], [0, 0, 1, 1], [], []>} : vector<16x64xf32>, vector<64x32xf32>, vector<16x32xf32> -> vector<16x32xf32>
    %79 = vector.broadcast %2 : vector<1x32xf32> to vector<16x32xf32>
    %80 = arith.addf %78, %79 : vector<16x32xf32>
    %cst_52 = arith.constant 0.000000e+00 : f32
    %81 = vector.broadcast %cst_52 : f32 to vector<16x32xf32>
    %82 = arith.maximumf %80, %81 : vector<16x32xf32>
    %c0_53 = arith.constant 0 : index
    %c0_54 = arith.constant 0 : index
    %83 = vector.load %arg11[%c0_53, %c0_54] : memref<16x32xf32, #tpu.memory_space<vmem>>, vector<16x32xf32>
    %84 = vector.extract_strided_slice %0 {offsets = [0, 6], sizes = [16, 1], strides = [1, 1]} : vector<16x8xf32> to vector<16x1xf32>
    %85 = vector.broadcast %84 : vector<16x1xf32> to vector<16x32xf32>
    %86 = arith.mulf %82, %85 : vector<16x32xf32>
    %87 = arith.addf %83, %86 : vector<16x32xf32>
    %c0_55 = arith.constant 0 : index
    %c0_56 = arith.constant 0 : index
    %88 = vector.load %arg11[%c0_55, %c0_56] : memref<16x32xf32, #tpu.memory_space<vmem>>, vector<16x32xf32>
    tpu.vector_store %arg11[%c0_55, %c0_56], %87 {strides = array<i32>} : memref<16x32xf32, #tpu.memory_space<vmem>>, vector<16x32xf32>,
    %c0_57 = arith.constant 0 : index
    %c448 = arith.constant 448 : index
    %89 = vector.load %arg1[%c0_57, %c448] : memref<16x512xf32, #tpu.memory_space<vmem>>, vector<16x64xf32>
    %cst_58 = arith.constant dense<0.000000e+00> : vector<16x32xf32>
    %90 = tpu.matmul %89, %1, %cst_58 {dimension_numbers = #tpu.dot_dimension_numbers<[1], [0], [0], [1], [0, 0, 1, 1], [], []>} : vector<16x64xf32>, vector<64x32xf32>, vector<16x32xf32> -> vector<16x32xf32>
    %91 = vector.broadcast %2 : vector<1x32xf32> to vector<16x32xf32>
    %92 = arith.addf %90, %91 : vector<16x32xf32>
    %cst_59 = arith.constant 0.000000e+00 : f32
    %93 = vector.broadcast %cst_59 : f32 to vector<16x32xf32>
    %94 = arith.maximumf %92, %93 : vector<16x32xf32>
    %c0_60 = arith.constant 0 : index
    %c0_61 = arith.constant 0 : index
    %95 = vector.load %arg11[%c0_60, %c0_61] : memref<16x32xf32, #tpu.memory_space<vmem>>, vector<16x32xf32>
    %96 = vector.extract_strided_slice %0 {offsets = [0, 7], sizes = [16, 1], strides = [1, 1]} : vector<16x8xf32> to vector<16x1xf32>
    %97 = vector.broadcast %96 : vector<16x1xf32> to vector<16x32xf32>
    %98 = arith.mulf %94, %97 : vector<16x32xf32>
    %99 = arith.addf %95, %98 : vector<16x32xf32>
    %c0_62 = arith.constant 0 : index
    %c0_63 = arith.constant 0 : index
    %100 = vector.load %arg11[%c0_62, %c0_63] : memref<16x32xf32, #tpu.memory_space<vmem>>, vector<16x32xf32>
    tpu.vector_store %arg11[%c0_62, %c0_63], %99 {strides = array<i32>} : memref<16x32xf32, #tpu.memory_space<vmem>>, vector<16x32xf32>,
    %cst_64 = arith.constant dense<0.000000e+00> : vector<16xf32>
    %101 = vector.multi_reduction <add>, %0, %cst_64 [1] : vector<16x8xf32> to vector<16xf32>
    %102 = vector.shape_cast %101 : vector<16xf32> to vector<16x1xf32>
    %c0_65 = arith.constant 0 : index
    %c0_66 = arith.constant 0 : index
    %103 = vector.load %arg11[%c0_65, %c0_66] : memref<16x32xf32, #tpu.memory_space<vmem>>, vector<16x32xf32>
    %c0_67 = arith.constant 0 : index
    %c0_68 = arith.constant 0 : index
    %104 = vector.load %arg6[%c0_67, %c0_68] : memref<32x32xf32, #tpu.memory_space<vmem>>, vector<32x32xf32>
    %cst_69 = arith.constant dense<0.000000e+00> : vector<16x32xf32>
    %105 = tpu.matmul %103, %104, %cst_69 {dimension_numbers = #tpu.dot_dimension_numbers<[1], [0], [0], [1], [0, 0, 1, 1], [], []>} : vector<16x32xf32>, vector<32x32xf32>, vector<16x32xf32> -> vector<16x32xf32>
    %c0_70 = arith.constant 0 : index
    %c0_71 = arith.constant 0 : index
    %106 = vector.load %arg7[%c0_70, %c0_71] : memref<1x32xf32, #tpu.memory_space<vmem>>, vector<1x32xf32>
    %107 = vector.broadcast %106 : vector<1x32xf32> to vector<16x32xf32>
    %108 = vector.broadcast %102 : vector<16x1xf32> to vector<16x32xf32>
    %109 = arith.mulf %107, %108 : vector<16x32xf32>
    %110 = arith.addf %105, %109 : vector<16x32xf32>
    %c0_72 = arith.constant 0 : index
    %c0_73 = arith.constant 0 : index
    %111 = vector.load %arg3[%c0_72, %c0_73] : memref<16x32xf32, #tpu.memory_space<vmem>>, vector<16x32xf32>
    %112 = arith.addf %111, %110 : vector<16x32xf32>
    %cst_74 = arith.constant dense<0.000000e+00> : vector<16xf32>
    %113 = vector.multi_reduction <add>, %112, %cst_74 [1] : vector<16x32xf32> to vector<16xf32>
    %114 = vector.shape_cast %113 : vector<16xf32> to vector<16x1xf32>
    %cst_75 = arith.constant 3.200000e+01 : f32
    %115 = vector.broadcast %cst_75 : f32 to vector<16x1xf32>
    %116 = arith.divf %114, %115 : vector<16x1xf32>
    %117 = vector.broadcast %116 : vector<16x1xf32> to vector<16x32xf32>
    %118 = arith.subf %112, %117 : vector<16x32xf32>
    %119 = arith.mulf %118, %118 : vector<16x32xf32>
    %cst_76 = arith.constant dense<0.000000e+00> : vector<16xf32>
    %120 = vector.multi_reduction <add>, %119, %cst_76 [1] : vector<16x32xf32> to vector<16xf32>
    %121 = vector.shape_cast %120 : vector<16xf32> to vector<16x1xf32>
    %cst_77 = arith.constant 3.200000e+01 : f32
    %122 = vector.broadcast %cst_77 : f32 to vector<16x1xf32>
    %123 = arith.divf %121, %122 : vector<16x1xf32>
    %124 = vector.broadcast %116 : vector<16x1xf32> to vector<16x32xf32>
    %125 = arith.subf %112, %124 : vector<16x32xf32>
    %cst_78 = arith.constant 9.99999974E-6 : f32
    %126 = vector.broadcast %cst_78 : f32 to vector<16x1xf32>
    %127 = arith.addf %123, %126 : vector<16x1xf32>
    %128 = math.rsqrt %127 : vector<16x1xf32>
    %129 = vector.broadcast %128 : vector<16x1xf32> to vector<16x32xf32>
    %130 = arith.mulf %125, %129 : vector<16x32xf32>
    %c0_79 = arith.constant 0 : index
    %c0_80 = arith.constant 0 : index
    %131 = vector.load %arg8[%c0_79, %c0_80] : memref<1x32xf32, #tpu.memory_space<vmem>>, vector<1x32xf32>
    %132 = vector.broadcast %131 : vector<1x32xf32> to vector<16x32xf32>
    %133 = arith.mulf %130, %132 : vector<16x32xf32>
    %c0_81 = arith.constant 0 : index
    %c0_82 = arith.constant 0 : index
    %134 = vector.load %arg9[%c0_81, %c0_82] : memref<1x32xf32, #tpu.memory_space<vmem>>, vector<1x32xf32>
    %135 = vector.broadcast %134 : vector<1x32xf32> to vector<16x32xf32>
    %136 = arith.addf %133, %135 : vector<16x32xf32>
    %c0_83 = arith.constant 0 : index
    %c0_84 = arith.constant 0 : index
    %137 = vector.load %arg10[%c0_83, %c0_84] : memref<16x32xf32, #tpu.memory_space<vmem>>, vector<16x32xf32>
    tpu.vector_store %arg10[%c0_83, %c0_84], %136 {strides = array<i32>} : memref<16x32xf32, #tpu.memory_space<vmem>>, vector<16x32xf32>,
    return
  }
  func.func @transform_0(%arg0: i32) -> (i32, i32) {
    %c0_i32 = arith.constant 0 : i32
    %c0_i32_0 = arith.constant 0 : i32
    return %arg0, %c0_i32 : i32, i32
  }
  func.func @transform_1(%arg0: i32) -> (i32, i32) {
    %c0_i32 = arith.constant 0 : i32
    %c0_i32_0 = arith.constant 0 : i32
    return %arg0, %c0_i32 : i32, i32
  }
  func.func @transform_2(%arg0: i32) -> (i32, i32) {
    %c0_i32 = arith.constant 0 : i32
    %c0_i32_0 = arith.constant 0 : i32
    return %arg0, %c0_i32 : i32, i32
  }
  func.func @transform_3(%arg0: i32) -> (i32, i32) {
    %c0_i32 = arith.constant 0 : i32
    %c0_i32_0 = arith.constant 0 : i32
    %c0_i32_1 = arith.constant 0 : i32
    return %c0_i32, %c0_i32_0 : i32, i32
  }
  func.func @transform_4(%arg0: i32) -> (i32, i32) {
    %c0_i32 = arith.constant 0 : i32
    %c0_i32_0 = arith.constant 0 : i32
    %c0_i32_1 = arith.constant 0 : i32
    return %c0_i32, %c0_i32_0 : i32, i32
  }
  func.func @transform_5(%arg0: i32) -> (i32, i32) {
    %c0_i32 = arith.constant 0 : i32
    %c0_i32_0 = arith.constant 0 : i32
    %c0_i32_1 = arith.constant 0 : i32
    return %c0_i32, %c0_i32_0 : i32, i32
  }
  func.func @transform_6(%arg0: i32) -> (i32, i32) {
    %c0_i32 = arith.constant 0 : i32
    %c0_i32_0 = arith.constant 0 : i32
    %c0_i32_1 = arith.constant 0 : i32
    return %c0_i32, %c0_i32_0 : i32, i32
  }
  func.func @transform_7(%arg0: i32) -> (i32, i32) {
    %c0_i32 = arith.constant 0 : i32
    %c0_i32_0 = arith.constant 0 : i32
    %c0_i32_1 = arith.constant 0 : i32
    return %c0_i32, %c0_i32_0 : i32, i32
  }
  func.func @transform_8(%arg0: i32) -> (i32, i32) {
    %c0_i32 = arith.constant 0 : i32
    %c0_i32_0 = arith.constant 0 : i32
    %c0_i32_1 = arith.constant 0 : i32
    return %c0_i32, %c0_i32_0 : i32, i32
  }
  func.func @transform_9(%arg0: i32) -> (i32, i32) {
    %c0_i32 = arith.constant 0 : i32
    %c0_i32_0 = arith.constant 0 : i32
    return %arg0, %c0_i32 : i32, i32
  }
}

</mosaic_0001>

<llo_original>
// kernel: refinement_forward.1
$region0: #{refinement_forward.1}
  #allocation0 [shape = 'u32[]', space=smem, size = 0x4, offset = 0x4, fixed_abs, tag = 'smem constant byte address 0x4 - core index']
  #allocation1 [shape = 'u32[144,128]{1,0:T(1,128)}', space=vmem, size = 0x12000, scoped, tag = 'internal scratch']
  #allocation2 [shape = 'f32[16,32]{1,0:T(8,128)}', space=vmem, size = 0x2000, scoped, tag = 'scratch operand']
  %s0 = inlined_call_operand.vmem [shape: f32[16,512], index: 0, kind: input, shape index: {}]
  %s1 = inlined_call_operand.vmem [shape: f32[16,8], index: 1, kind: input, shape index: {}]
  %s2 = inlined_call_operand.vmem [shape: f32[16,32], index: 2, kind: input, shape index: {}]
  %s3 = inlined_call_operand.vmem [shape: f32[64,32], index: 3, kind: input, shape index: {}]
  %s4 = inlined_call_operand.vmem [shape: f32[1,32], index: 4, kind: input, shape index: {}]
  %s5 = inlined_call_operand.vmem [shape: f32[32,32], index: 5, kind: input, shape index: {}]
  %s6 = inlined_call_operand.vmem [shape: f32[1,32], index: 6, kind: input, shape index: {}]
  %s7 = inlined_call_operand.vmem [shape: f32[1,32], index: 7, kind: input, shape index: {}]
  %s8 = inlined_call_operand.vmem [shape: f32[1,32], index: 8, kind: input, shape index: {}]
  %s9 = inlined_call_operand.hbm [shape: f32[16,32], index: 9, kind: output, shape index: {}]
  %s10 = sld [smem:[#allocation0]]
  $region46: #{refinement_forward.1} parent=0
    _
  %s12 = ssub.s32 1, %s10
  %s13 = scalar_select 0, %s12, %s10
  $region1: #{refinement_forward.1} parent=0
    #allocation3 [shape = 'u8[8192]{0}', space=vmem, size = 0x2000, scoped, tag = 'output window, operand 0, single buffered']
    #allocation4 [shape = 's32[1]{0}', space=sflag, size = 0x4, scoped, tag = 'scoped memory for refinement_forward.1']
    %14 = vsyncpa [#allocation4], 0
    // Predicated region
    $region2: #{refinement_forward.1} parent=1 // pred_check
      _
    $region3: #{refinement_forward.1} parent=1 // pred_check_branch
      %16 = sbr.rel (0) target = $region5
    $region4: #{refinement_forward.1} parent=1 // pred_region
      _
    $region5: #{refinement_forward.1} parent=1 // pred_fallthru
      _
    // Predicated region
    $region6: #{refinement_forward.1} parent=1 // pred_check
      _
    $region7: #{refinement_forward.1} parent=1 // pred_check_branch
      %18 = sbr.rel (0) target = $region9
    $region8: #{refinement_forward.1} parent=1 // pred_region
      _
    $region9: #{refinement_forward.1} parent=1 // pred_fallthru
      _
    // Predicated region
    $region10: #{refinement_forward.1} parent=1 // pred_check
      _
    $region11: #{refinement_forward.1} parent=1 // pred_check_branch
      %20 = sbr.rel (0) target = $region13
    $region12: #{refinement_forward.1} parent=1 // pred_region
      _
    $region13: #{refinement_forward.1} parent=1 // pred_fallthru
      _
    // Predicated region
    $region14: #{refinement_forward.1} parent=1 // pred_check
      _
    $region15: #{refinement_forward.1} parent=1 // pred_check_branch
      %22 = sbr.rel (0) target = $region17
    $region16: #{refinement_forward.1} parent=1 // pred_region
      _
    $region17: #{refinement_forward.1} parent=1 // pred_fallthru
      _
    // Predicated region
    $region18: #{refinement_forward.1} parent=1 // pred_check
      _
    $region19: #{refinement_forward.1} parent=1 // pred_check_branch
      %24 = sbr.rel (0) target = $region21
    $region20: #{refinement_forward.1} parent=1 // pred_region
      _
    $region21: #{refinement_forward.1} parent=1 // pred_fallthru
      _
    // Predicated region
    $region22: #{refinement_forward.1} parent=1 // pred_check
      _
    $region23: #{refinement_forward.1} parent=1 // pred_check_branch
      %26 = sbr.rel (0) target = $region25
    $region24: #{refinement_forward.1} parent=1 // pred_region
      _
    $region25: #{refinement_forward.1} parent=1 // pred_fallthru
      _
    // Predicated region
    $region26: #{refinement_forward.1} parent=1 // pred_check
      _
    $region27: #{refinement_forward.1} parent=1 // pred_check_branch
      %28 = sbr.rel (0) target = $region29
    $region28: #{refinement_forward.1} parent=1 // pred_region
      _
    $region29: #{refinement_forward.1} parent=1 // pred_fallthru
      _
    // Predicated region
    $region30: #{refinement_forward.1} parent=1 // pred_check
      _
    $region31: #{refinement_forward.1} parent=1 // pred_check_branch
      %30 = sbr.rel (0) target = $region33
    $region32: #{refinement_forward.1} parent=1 // pred_region
      _
    $region33: #{refinement_forward.1} parent=1 // pred_fallthru
      _
    // Predicated region
    $region34: #{refinement_forward.1} parent=1 // pred_check
      _
    $region35: #{refinement_forward.1} parent=1 // pred_check_branch
      %32 = sbr.rel (0) target = $region37
    $region36: #{refinement_forward.1} parent=1 // pred_region
      _
    $region37: #{refinement_forward.1} parent=1 // pred_fallthru
      _
    %v33 = vld [vmem:[%s1] sm:$0xff]
    %v34 = vld [vmem:[%s1 + $0x8] sm:$0xff]
    %v35 = vld [vmem:[%s3] sm:$0xff]
    %v36 = vld [vmem:[%s3 + $0x8] sm:$0xff]
    %v37 = vld [vmem:[%s3 + $0x10] sm:$0xff]
    %v38 = vld [vmem:[%s3 + $0x18] sm:$0xff]
    %v39 = vld [vmem:[%s3 + $0x20] sm:$0xff]
    %v40 = vld [vmem:[%s3 + $0x28] sm:$0xff]
    %v41 = vld [vmem:[%s3 + $0x30] sm:$0xff]
    %v42 = vld [vmem:[%s3 + $0x38] sm:$0xff]
    %v43 = vld [vmem:[%s4] sm:$0x1]
    %vm44 = vcmask 261120
    %45 = vst.msk [vmem:[#allocation2] sm:$0xff] %vm44, 0.0
    %46 = vst.msk [vmem:[#allocation2 + $0x8] sm:$0xff] %vm44, 0.0
    %v47 = vld [vmem:[%s0] sm:$0xff]
    %v48 = vld [vmem:[%s0 + $0x20] sm:$0xff]
    %v50 = vlaneseq
    %v51 = vshrl.u32 %v50, 7
    %v52 = vsub.s32 0, %v51
    %v53 = vrot.slane %v43, %v52
    %vm55 = vcmask 523264
    %v57 = vsel %vm55, %v47, 0
    %v60 = vsel %vm55, %v48, 0
    %62 = vmatprep.subr.mxu0 0.0
    %63 = vmatpush1.msra.mxu0 0.0
    %64 = vmatprep.subr.mxu0 0.0
    %65 = vmatpush1.msra.mxu0 0.0
    %66 = vmatprep.subr.mxu0 0.0
    %67 = vmatpush1.msra.mxu0 0.0
    %68 = vmatprep.subr.mxu0 0.0
    %69 = vmatpush1.msra.mxu0 0.0
    %70 = vmatprep.subr.mxu0 0.0
    %71 = vmatpush1.msra.mxu0 0.0
    %72 = vmatprep.subr.mxu0 0.0
    %73 = vmatpush1.msra.mxu0 0.0
    %74 = vmatprep.subr.mxu0 0.0
    %75 = vmatpush1.msra.mxu0 0.0
    %76 = vmatprep.subr.mxu0 0.0
    %77 = vmatpush1.msra.mxu0 0.0
    %78 = vmatprep.subr.mxu0 0.0
    %79 = vmatpush1.msra.mxu0 %v42
    %80 = vmatprep.subr.mxu0 0.0
    %81 = vmatpush1.msra.mxu0 %v41
    %82 = vmatprep.subr.mxu0 0.0
    %83 = vmatpush1.msra.mxu0 %v40
    %84 = vmatprep.subr.mxu0 0.0
    %85 = vmatpush1.msra.mxu0 %v39
    %86 = vmatprep.subr.mxu0 0.0
    %87 = vmatpush1.msra.mxu0 %v38
    %88 = vmatprep.subr.mxu0 0.0
    %89 = vmatpush1.msra.mxu0 %v37
    %90 = vmatprep.subr.mxu0 0.0
    %91 = vmatpush1.msra.mxu0 %v36
    %92 = vmatprep.subr.mxu0 0.0
    %93 = vmatpush1.msra.mxu0 %v35
    %94 = vmatprep.subr.mxu0 0.0
    %95 = vmatpush2.msra.mxu0 0.0
    %96 = vmatprep.subr.mxu0 0.0
    %97 = vmatpush2.msra.mxu0 0.0
    %98 = vmatprep.subr.mxu0 0.0
    %99 = vmatpush2.msra.mxu0 0.0
    %100 = vmatprep.subr.mxu0 0.0
    %101 = vmatpush2.msra.mxu0 0.0
    %102 = vmatprep.subr.mxu0 0.0
    %103 = vmatpush2.msra.mxu0 0.0
    %104 = vmatprep.subr.mxu0 0.0
    %105 = vmatpush2.msra.mxu0 0.0
    %106 = vmatprep.subr.mxu0 0.0
    %107 = vmatpush2.msra.mxu0 0.0
    %108 = vmatprep.subr.mxu0 0.0
    %109 = vmatpush2.msra.mxu0 0.0
    %110 = vmatprep.subr.mxu0 0.0
    %111 = vmatpush2.msra.mxu0 0.0
    %112 = vmatprep.subr.mxu0 0.0
    %113 = vmatpush2.msra.mxu0 0.0
    %114 = vmatprep.subr.mxu0 0.0
    %115 = vmatpush2.msra.mxu0 0.0
    %116 = vmatprep.subr.mxu0 0.0
    %117 = vmatpush2.msra.mxu0 0.0
    %118 = vmatprep.subr.mxu0 0.0
    %119 = vmatpush2.msra.mxu0 0.0
    %120 = vmatprep.subr.mxu0 0.0
    %121 = vmatpush2.msra.mxu0 0.0
    %122 = vmatprep.subr.mxu0 0.0
    %123 = vmatpush2.msra.mxu0 0.0
    %124 = vmatprep.subr.mxu0 0.0
    %125 = vmatpush2.msra.mxu0 0.0
    %126 = vmatprep.mubr.f32.mxu0 0.0
    %127 = vmatmul.mubr.f32.gmra.mxu0 %v57
    %v128 = vpop.f32.mrf.mxu0
    %v129 = vadd.f32 %v53, %v128
    %v130 = vpop.f32.mrf.mxu0
    %131 = vmatprep.mubr.f32.mxu0 0.0
    %132 = vmatmul.mubr.f32.gmra.mxu0 %v60
    %v133 = vpop.f32.mrf.mxu0
    %v134 = vadd.f32 %v53, %v133
    %v135 = vpop.f32.mrf.mxu0
    %136 = vdwg.mxu0
    %v137 = vmax.f32 %v129, 0.0
    %v138 = vmax.f32 %v134, 0.0
    %v139 = vld [vmem:[#allocation2] sm:$0xff]
    %v140 = vld [vmem:[#allocation2 + $0x8] sm:$0xff]
    %142 = vset.pattern.permute.xlu0 0
    %143 = vperm.xlu0 %142, %v33
    %v144 = vpop.permute.xlu0 %143
    %147 = vset.pattern.permute.xlu0 0
    %148 = vperm.xlu0 %147, %v34
    %v149 = vpop.permute.xlu0 %148
    %v151 = vmul.f32 %v137, %v144
    %v152 = vmul.f32 %v138, %v149
    %v153 = vadd.f32 %v139, %v151
    %v154 = vadd.f32 %v140, %v152
    %155 = vst.msk [vmem:[#allocation2] sm:$0xff] %vm44, %v153
    %156 = vst.msk [vmem:[#allocation2 + $0x8] sm:$0xff] %vm44, %v154
    %v157 = vld [vmem:[%s0] sm:$0xff]
    %v158 = vld [vmem:[%s0 + $0x20] sm:$0xff]
    %161 = vrot.lane.b32.xlu0 %v157, 64
    %v162 = vpop.permute.xlu0 %161
    %163 = vrot.lane.b32.xlu0 %v158, 64
    %v164 = vpop.permute.xlu0 %163
    %v165 = vsel %vm55, %v162, 0
    %v167 = vsel %vm55, %v164, 0
    %169 = vmatprep.subr.mxu0 0.0
    %170 = vmatpush1.msra.mxu0 0.0
    %171 = vmatprep.subr.mxu0 0.0
    %172 = vmatpush1.msra.mxu0 0.0
    %173 = vmatprep.subr.mxu0 0.0
    %174 = vmatpush1.msra.mxu0 0.0
    %175 = vmatprep.subr.mxu0 0.0
    %176 = vmatpush1.msra.mxu0 0.0
    %177 = vmatprep.subr.mxu0 0.0
    %178 = vmatpush1.msra.mxu0 0.0
    %179 = vmatprep.subr.mxu0 0.0
    %180 = vmatpush1.msra.mxu0 0.0
    %181 = vmatprep.subr.mxu0 0.0
    %182 = vmatpush1.msra.mxu0 0.0
    %183 = vmatprep.subr.mxu0 0.0
    %184 = vmatpush1.msra.mxu0 0.0
    %185 = vmatprep.subr.mxu0 0.0
    %186 = vmatpush1.msra.mxu0 %v42
    %187 = vmatprep.subr.mxu0 0.0
    %188 = vmatpush1.msra.mxu0 %v41
    %189 = vmatprep.subr.mxu0 0.0
    %190 = vmatpush1.msra.mxu0 %v40
    %191 = vmatprep.subr.mxu0 0.0
    %192 = vmatpush1.msra.mxu0 %v39
    %193 = vmatprep.subr.mxu0 0.0
    %194 = vmatpush1.msra.mxu0 %v38
    %195 = vmatprep.subr.mxu0 0.0
    %196 = vmatpush1.msra.mxu0 %v37
    %197 = vmatprep.subr.mxu0 0.0
    %198 = vmatpush1.msra.mxu0 %v36
    %199 = vmatprep.subr.mxu0 0.0
    %200 = vmatpush1.msra.mxu0 %v35
    %201 = vmatprep.subr.mxu0 0.0
    %202 = vmatpush2.msra.mxu0 0.0
    %203 = vmatprep.subr.mxu0 0.0
    %204 = vmatpush2.msra.mxu0 0.0
    %205 = vmatprep.subr.mxu0 0.0
    %206 = vmatpush2.msra.mxu0 0.0
    %207 = vmatprep.subr.mxu0 0.0
    %208 = vmatpush2.msra.mxu0 0.0
    %209 = vmatprep.subr.mxu0 0.0
    %210 = vmatpush2.msra.mxu0 0.0
    %211 = vmatprep.subr.mxu0 0.0
    %212 = vmatpush2.msra.mxu0 0.0
    %213 = vmatprep.subr.mxu0 0.0
    %214 = vmatpush2.msra.mxu0 0.0
    %215 = vmatprep.subr.mxu0 0.0
    %216 = vmatpush2.msra.mxu0 0.0
    %217 = vmatprep.subr.mxu0 0.0
    %218 = vmatpush2.msra.mxu0 0.0
    %219 = vmatprep.subr.mxu0 0.0
    %220 = vmatpush2.msra.mxu0 0.0
    %221 = vmatprep.subr.mxu0 0.0
    %222 = vmatpush2.msra.mxu0 0.0
    %223 = vmatprep.subr.mxu0 0.0
    %224 = vmatpush2.msra.mxu0 0.0
    %225 = vmatprep.subr.mxu0 0.0
    %226 = vmatpush2.msra.mxu0 0.0
    %227 = vmatprep.subr.mxu0 0.0
    %228 = vmatpush2.msra.mxu0 0.0
    %229 = vmatprep.subr.mxu0 0.0
    %230 = vmatpush2.msra.mxu0 0.0
    %231 = vmatprep.subr.mxu0 0.0
    %232 = vmatpush2.msra.mxu0 0.0
    %233 = vmatprep.mubr.f32.mxu0 0.0
    %234 = vmatmul.mubr.f32.gmra.mxu0 %v165
    %v235 = vpop.f32.mrf.mxu0
    %v236 = vadd.f32 %v53, %v235
    %v237 = vpop.f32.mrf.mxu0
    %238 = vmatprep.mubr.f32.mxu0 0.0
    %239 = vmatmul.mubr.f32.gmra.mxu0 %v167
    %v240 = vpop.f32.mrf.mxu0
    %v241 = vadd.f32 %v53, %v240
    %v242 = vpop.f32.mrf.mxu0
    %243 = vdwg.mxu0
    %v244 = vmax.f32 %v236, 0.0
    %v245 = vmax.f32 %v241, 0.0
    %v246 = vld [vmem:[#allocation2] sm:$0xff]
    %v247 = vld [vmem:[#allocation2 + $0x8] sm:$0xff]
    %248 = vset.pattern.permute.xlu0 1
    %249 = vperm.xlu0 %248, %v33
    %v250 = vpop.permute.xlu0 %249
    %252 = vset.pattern.permute.xlu0 1
    %253 = vperm.xlu0 %252, %v34
    %v254 = vpop.permute.xlu0 %253
    %v256 = vmul.f32 %v244, %v250
    %v257 = vmul.f32 %v245, %v254
    %v258 = vadd.f32 %v246, %v256
    %v259 = vadd.f32 %v247, %v257
    %260 = vst.msk [vmem:[#allocation2] sm:$0xff] %vm44, %v258
    %261 = vst.msk [vmem:[#allocation2 + $0x8] sm:$0xff] %vm44, %v259
    %v262 = vld [vmem:[%s0 + $0x8] sm:$0xff]
    %v263 = vld [vmem:[%s0 + $0x28] sm:$0xff]
    %v265 = vsel %vm55, %v262, 0
    %v268 = vsel %vm55, %v263, 0
    %270 = vmatprep.subr.mxu0 0.0
    %271 = vmatpush1.msra.mxu0 0.0
    %272 = vmatprep.subr.mxu0 0.0
    %273 = vmatpush1.msra.mxu0 0.0
    %274 = vmatprep.subr.mxu0 0.0
    %275 = vmatpush1.msra.mxu0 0.0
    %276 = vmatprep.subr.mxu0 0.0
    %277 = vmatpush1.msra.mxu0 0.0
    %278 = vmatprep.subr.mxu0 0.0
    %279 = vmatpush1.msra.mxu0 0.0
    %280 = vmatprep.subr.mxu0 0.0
    %281 = vmatpush1.msra.mxu0 0.0
    %282 = vmatprep.subr.mxu0 0.0
    %283 = vmatpush1.msra.mxu0 0.0
    %284 = vmatprep.subr.mxu0 0.0
    %285 = vmatpush1.msra.mxu0 0.0
    %286 = vmatprep.subr.mxu0 0.0
    %287 = vmatpush1.msra.mxu0 %v42
    %288 = vmatprep.subr.mxu0 0.0
    %289 = vmatpush1.msra.mxu0 %v41
    %290 = vmatprep.subr.mxu0 0.0
    %291 = vmatpush1.msra.mxu0 %v40
    %292 = vmatprep.subr.mxu0 0.0
    %293 = vmatpush1.msra.mxu0 %v39
    %294 = vmatprep.subr.mxu0 0.0
    %295 = vmatpush1.msra.mxu0 %v38
    %296 = vmatprep.subr.mxu0 0.0
    %297 = vmatpush1.msra.mxu0 %v37
    %298 = vmatprep.subr.mxu0 0.0
    %299 = vmatpush1.msra.mxu0 %v36
    %300 = vmatprep.subr.mxu0 0.0
    %301 = vmatpush1.msra.mxu0 %v35
    %302 = vmatprep.subr.mxu0 0.0
    %303 = vmatpush2.msra.mxu0 0.0
    %304 = vmatprep.subr.mxu0 0.0
    %305 = vmatpush2.msra.mxu0 0.0
    %306 = vmatprep.subr.mxu0 0.0
    %307 = vmatpush2.msra.mxu0 0.0
    %308 = vmatprep.subr.mxu0 0.0
    %309 = vmatpush2.msra.mxu0 0.0
    %310 = vmatprep.subr.mxu0 0.0
    %311 = vmatpush2.msra.mxu0 0.0
    %312 = vmatprep.subr.mxu0 0.0
    %313 = vmatpush2.msra.mxu0 0.0
    %314 = vmatprep.subr.mxu0 0.0
    %315 = vmatpush2.msra.mxu0 0.0
    %316 = vmatprep.subr.mxu0 0.0
    %317 = vmatpush2.msra.mxu0 0.0
    %318 = vmatprep.subr.mxu0 0.0
    %319 = vmatpush2.msra.mxu0 0.0
    %320 = vmatprep.subr.mxu0 0.0
    %321 = vmatpush2.msra.mxu0 0.0
    %322 = vmatprep.subr.mxu0 0.0
    %323 = vmatpush2.msra.mxu0 0.0
    %324 = vmatprep.subr.mxu0 0.0
    %325 = vmatpush2.msra.mxu0 0.0
    %326 = vmatprep.subr.mxu0 0.0
    %327 = vmatpush2.msra.mxu0 0.0
    %328 = vmatprep.subr.mxu0 0.0
    %329 = vmatpush2.msra.mxu0 0.0
    %330 = vmatprep.subr.mxu0 0.0
    %331 = vmatpush2.msra.mxu0 0.0
    %332 = vmatprep.subr.mxu0 0.0
    %333 = vmatpush2.msra.mxu0 0.0
    %334 = vmatprep.mubr.f32.mxu0 0.0
    %335 = vmatmul.mubr.f32.gmra.mxu0 %v265
    %v336 = vpop.f32.mrf.mxu0
    %v337 = vadd.f32 %v53, %v336
    %v338 = vpop.f32.mrf.mxu0
    %339 = vmatprep.mubr.f32.mxu0 0.0
    %340 = vmatmul.mubr.f32.gmra.mxu0 %v268
    %v341 = vpop.f32.mrf.mxu0
    %v342 = vadd.f32 %v53, %v341
    %v343 = vpop.f32.mrf.mxu0
    %344 = vdwg.mxu0
    %v345 = vmax.f32 %v337, 0.0
    %v346 = vmax.f32 %v342, 0.0
    %v347 = vld [vmem:[#allocation2] sm:$0xff]
    %v348 = vld [vmem:[#allocation2 + $0x8] sm:$0xff]
    %349 = vset.pattern.permute.xlu0 2
    %350 = vperm.xlu0 %349, %v33
    %v351 = vpop.permute.xlu0 %350
    %353 = vset.pattern.permute.xlu0 2
    %354 = vperm.xlu0 %353, %v34
    %v355 = vpop.permute.xlu0 %354
    %v357 = vmul.f32 %v345, %v351
    %v358 = vmul.f32 %v346, %v355
    %v359 = vadd.f32 %v347, %v357
    %v360 = vadd.f32 %v348, %v358
    %361 = vst.msk [vmem:[#allocation2] sm:$0xff] %vm44, %v359
    %362 = vst.msk [vmem:[#allocation2 + $0x8] sm:$0xff] %vm44, %v360
    %v363 = vld [vmem:[%s0 + $0x8] sm:$0xff]
    %v364 = vld [vmem:[%s0 + $0x28] sm:$0xff]
    %367 = vrot.lane.b32.xlu0 %v363, 64
    %v368 = vpop.permute.xlu0 %367
    %369 = vrot.lane.b32.xlu0 %v364, 64
    %v370 = vpop.permute.xlu0 %369
    %v371 = vsel %vm55, %v368, 0
    %v373 = vsel %vm55, %v370, 0
    %375 = vmatprep.subr.mxu0 0.0
    %376 = vmatpush1.msra.mxu0 0.0
    %377 = vmatprep.subr.mxu0 0.0
    %378 = vmatpush1.msra.mxu0 0.0
    %379 = vmatprep.subr.mxu0 0.0
    %380 = vmatpush1.msra.mxu0 0.0
    %381 = vmatprep.subr.mxu0 0.0
    %382 = vmatpush1.msra.mxu0 0.0
    %383 = vmatprep.subr.mxu0 0.0
    %384 = vmatpush1.msra.mxu0 0.0
    %385 = vmatprep.subr.mxu0 0.0
    %386 = vmatpush1.msra.mxu0 0.0
    %387 = vmatprep.subr.mxu0 0.0
    %388 = vmatpush1.msra.mxu0 0.0
    %389 = vmatprep.subr.mxu0 0.0
    %390 = vmatpush1.msra.mxu0 0.0
    %391 = vmatprep.subr.mxu0 0.0
    %392 = vmatpush1.msra.mxu0 %v42
    %393 = vmatprep.subr.mxu0 0.0
    %394 = vmatpush1.msra.mxu0 %v41
    %395 = vmatprep.subr.mxu0 0.0
    %396 = vmatpush1.msra.mxu0 %v40
    %397 = vmatprep.subr.mxu0 0.0
    %398 = vmatpush1.msra.mxu0 %v39
    %399 = vmatprep.subr.mxu0 0.0
    %400 = vmatpush1.msra.mxu0 %v38
    %401 = vmatprep.subr.mxu0 0.0
    %402 = vmatpush1.msra.mxu0 %v37
    %403 = vmatprep.subr.mxu0 0.0
    %404 = vmatpush1.msra.mxu0 %v36
    %405 = vmatprep.subr.mxu0 0.0
    %406 = vmatpush1.msra.mxu0 %v35
    %407 = vmatprep.subr.mxu0 0.0
    %408 = vmatpush2.msra.mxu0 0.0
    %409 = vmatprep.subr.mxu0 0.0
    %410 = vmatpush2.msra.mxu0 0.0
    %411 = vmatprep.subr.mxu0 0.0
    %412 = vmatpush2.msra.mxu0 0.0
    %413 = vmatprep.subr.mxu0 0.0
    %414 = vmatpush2.msra.mxu0 0.0
    %415 = vmatprep.subr.mxu0 0.0
    %416 = vmatpush2.msra.mxu0 0.0
    %417 = vmatprep.subr.mxu0 0.0
    %418 = vmatpush2.msra.mxu0 0.0
    %419 = vmatprep.subr.mxu0 0.0
    %420 = vmatpush2.msra.mxu0 0.0
    %421 = vmatprep.subr.mxu0 0.0
    %422 = vmatpush2.msra.mxu0 0.0
    %423 = vmatprep.subr.mxu0 0.0
    %424 = vmatpush2.msra.mxu0 0.0
    %425 = vmatprep.subr.mxu0 0.0
    %426 = vmatpush2.msra.mxu0 0.0
    %427 = vmatprep.subr.mxu0 0.0
    %428 = vmatpush2.msra.mxu0 0.0
    %429 = vmatprep.subr.mxu0 0.0
    %430 = vmatpush2.msra.mxu0 0.0
    %431 = vmatprep.subr.mxu0 0.0
    %432 = vmatpush2.msra.mxu0 0.0
    %433 = vmatprep.subr.mxu0 0.0
    %434 = vmatpush2.msra.mxu0 0.0
    %435 = vmatprep.subr.mxu0 0.0
    %436 = vmatpush2.msra.mxu0 0.0
    %437 = vmatprep.subr.mxu0 0.0
    %438 = vmatpush2.msra.mxu0 0.0
    %439 = vmatprep.mubr.f32.mxu0 0.0
    %440 = vmatmul.mubr.f32.gmra.mxu0 %v371
    %v441 = vpop.f32.mrf.mxu0
    %v442 = vadd.f32 %v53, %v441
    %v443 = vpop.f32.mrf.mxu0
    %444 = vmatprep.mubr.f32.mxu0 0.0
    %445 = vmatmul.mubr.f32.gmra.mxu0 %v373
    %v446 = vpop.f32.mrf.mxu0
    %v447 = vadd.f32 %v53, %v446
    %v448 = vpop.f32.mrf.mxu0
    %449 = vdwg.mxu0
    %v450 = vmax.f32 %v442, 0.0
    %v451 = vmax.f32 %v447, 0.0
    %v452 = vld [vmem:[#allocation2] sm:$0xff]
    %v453 = vld [vmem:[#allocation2 + $0x8] sm:$0xff]
    %454 = vset.pattern.permute.xlu0 3
    %455 = vperm.xlu0 %454, %v33
    %v456 = vpop.permute.xlu0 %455
    %458 = vset.pattern.permute.xlu0 3
    %459 = vperm.xlu0 %458, %v34
    %v460 = vpop.permute.xlu0 %459
    %v462 = vmul.f32 %v450, %v456
    %v463 = vmul.f32 %v451, %v460
    %v464 = vadd.f32 %v452, %v462
    %v465 = vadd.f32 %v453, %v463
    %466 = vst.msk [vmem:[#allocation2] sm:$0xff] %vm44, %v464
    %467 = vst.msk [vmem:[#allocation2 + $0x8] sm:$0xff] %vm44, %v465
    %v468 = vld [vmem:[%s0 + $0x10] sm:$0xff]
    %v469 = vld [vmem:[%s0 + $0x30] sm:$0xff]
    %v471 = vsel %vm55, %v468, 0
    %v474 = vsel %vm55, %v469, 0
    %476 = vmatprep.subr.mxu0 0.0
    %477 = vmatpush1.msra.mxu0 0.0
    %478 = vmatprep.subr.mxu0 0.0
    %479 = vmatpush1.msra.mxu0 0.0
    %480 = vmatprep.subr.mxu0 0.0
    %481 = vmatpush1.msra.mxu0 0.0
    %482 = vmatprep.subr.mxu0 0.0
    %483 = vmatpush1.msra.mxu0 0.0
    %484 = vmatprep.subr.mxu0 0.0
    %485 = vmatpush1.msra.mxu0 0.0
    %486 = vmatprep.subr.mxu0 0.0
    %487 = vmatpush1.msra.mxu0 0.0
    %488 = vmatprep.subr.mxu0 0.0
    %489 = vmatpush1.msra.mxu0 0.0
    %490 = vmatprep.subr.mxu0 0.0
    %491 = vmatpush1.msra.mxu0 0.0
    %492 = vmatprep.subr.mxu0 0.0
    %493 = vmatpush1.msra.mxu0 %v42
    %494 = vmatprep.subr.mxu0 0.0
    %495 = vmatpush1.msra.mxu0 %v41
    %496 = vmatprep.subr.mxu0 0.0
    %497 = vmatpush1.msra.mxu0 %v40
    %498 = vmatprep.subr.mxu0 0.0
    %499 = vmatpush1.msra.mxu0 %v39
    %500 = vmatprep.subr.mxu0 0.0
    %501 = vmatpush1.msra.mxu0 %v38
    %502 = vmatprep.subr.mxu0 0.0
    %503 = vmatpush1.msra.mxu0 %v37
    %504 = vmatprep.subr.mxu0 0.0
    %505 = vmatpush1.msra.mxu0 %v36
    %506 = vmatprep.subr.mxu0 0.0
    %507 = vmatpush1.msra.mxu0 %v35
    %508 = vmatprep.subr.mxu0 0.0
    %509 = vmatpush2.msra.mxu0 0.0
    %510 = vmatprep.subr.mxu0 0.0
    %511 = vmatpush2.msra.mxu0 0.0
    %512 = vmatprep.subr.mxu0 0.0
    %513 = vmatpush2.msra.mxu0 0.0
    %514 = vmatprep.subr.mxu0 0.0
    %515 = vmatpush2.msra.mxu0 0.0
    %516 = vmatprep.subr.mxu0 0.0
    %517 = vmatpush2.msra.mxu0 0.0
    %518 = vmatprep.subr.mxu0 0.0
    %519 = vmatpush2.msra.mxu0 0.0
    %520 = vmatprep.subr.mxu0 0.0
    %521 = vmatpush2.msra.mxu0 0.0
    %522 = vmatprep.subr.mxu0 0.0
    %523 = vmatpush2.msra.mxu0 0.0
    %524 = vmatprep.subr.mxu0 0.0
    %525 = vmatpush2.msra.mxu0 0.0
    %526 = vmatprep.subr.mxu0 0.0
    %527 = vmatpush2.msra.mxu0 0.0
    %528 = vmatprep.subr.mxu0 0.0
    %529 = vmatpush2.msra.mxu0 0.0
    %530 = vmatprep.subr.mxu0 0.0
    %531 = vmatpush2.msra.mxu0 0.0
    %532 = vmatprep.subr.mxu0 0.0
    %533 = vmatpush2.msra.mxu0 0.0
    %534 = vmatprep.subr.mxu0 0.0
    %535 = vmatpush2.msra.mxu0 0.0
    %536 = vmatprep.subr.mxu0 0.0
    %537 = vmatpush2.msra.mxu0 0.0
    %538 = vmatprep.subr.mxu0 0.0
    %539 = vmatpush2.msra.mxu0 0.0
    %540 = vmatprep.mubr.f32.mxu0 0.0
    %541 = vmatmul.mubr.f32.gmra.mxu0 %v471
    %v542 = vpop.f32.mrf.mxu0
    %v543 = vadd.f32 %v53, %v542
    %v544 = vpop.f32.mrf.mxu0
    %545 = vmatprep.mubr.f32.mxu0 0.0
    %546 = vmatmul.mubr.f32.gmra.mxu0 %v474
    %v547 = vpop.f32.mrf.mxu0
    %v548 = vadd.f32 %v53, %v547
    %v549 = vpop.f32.mrf.mxu0
    %550 = vdwg.mxu0
    %v551 = vmax.f32 %v543, 0.0
    %v552 = vmax.f32 %v548, 0.0
    %v553 = vld [vmem:[#allocation2] sm:$0xff]
    %v554 = vld [vmem:[#allocation2 + $0x8] sm:$0xff]
    %555 = vset.pattern.permute.xlu0 4
    %556 = vperm.xlu0 %555, %v33
    %v557 = vpop.permute.xlu0 %556
    %559 = vset.pattern.permute.xlu0 4
    %560 = vperm.xlu0 %559, %v34
    %v561 = vpop.permute.xlu0 %560
    %v563 = vmul.f32 %v551, %v557
    %v564 = vmul.f32 %v552, %v561
    %v565 = vadd.f32 %v553, %v563
    %v566 = vadd.f32 %v554, %v564
    %567 = vst.msk [vmem:[#allocation2] sm:$0xff] %vm44, %v565
    %568 = vst.msk [vmem:[#allocation2 + $0x8] sm:$0xff] %vm44, %v566
    %v569 = vld [vmem:[%s0 + $0x10] sm:$0xff]
    %v570 = vld [vmem:[%s0 + $0x30] sm:$0xff]
    %573 = vrot.lane.b32.xlu0 %v569, 64
    %v574 = vpop.permute.xlu0 %573
    %575 = vrot.lane.b32.xlu0 %v570, 64
    %v576 = vpop.permute.xlu0 %575
    %v577 = vsel %vm55, %v574, 0
    %v579 = vsel %vm55, %v576, 0
    %581 = vmatprep.subr.mxu0 0.0
    %582 = vmatpush1.msra.mxu0 0.0
    %583 = vmatprep.subr.mxu0 0.0
    %584 = vmatpush1.msra.mxu0 0.0
    %585 = vmatprep.subr.mxu0 0.0
    %586 = vmatpush1.msra.mxu0 0.0
    %587 = vmatprep.subr.mxu0 0.0
    %588 = vmatpush1.msra.mxu0 0.0
    %589 = vmatprep.subr.mxu0 0.0
    %590 = vmatpush1.msra.mxu0 0.0
    %591 = vmatprep.subr.mxu0 0.0
    %592 = vmatpush1.msra.mxu0 0.0
    %593 = vmatprep.subr.mxu0 0.0
    %594 = vmatpush1.msra.mxu0 0.0
    %595 = vmatprep.subr.mxu0 0.0
    %596 = vmatpush1.msra.mxu0 0.0
    %597 = vmatprep.subr.mxu0 0.0
    %598 = vmatpush1.msra.mxu0 %v42
    %599 = vmatprep.subr.mxu0 0.0
    %600 = vmatpush1.msra.mxu0 %v41
    %601 = vmatprep.subr.mxu0 0.0
    %602 = vmatpush1.msra.mxu0 %v40
    %603 = vmatprep.subr.mxu0 0.0
    %604 = vmatpush1.msra.mxu0 %v39
    %605 = vmatprep.subr.mxu0 0.0
    %606 = vmatpush1.msra.mxu0 %v38
    %607 = vmatprep.subr.mxu0 0.0
    %608 = vmatpush1.msra.mxu0 %v37
    %609 = vmatprep.subr.mxu0 0.0
    %610 = vmatpush1.msra.mxu0 %v36
    %611 = vmatprep.subr.mxu0 0.0
    %612 = vmatpush1.msra.mxu0 %v35
    %613 = vmatprep.subr.mxu0 0.0
    %614 = vmatpush2.msra.mxu0 0.0
    %615 = vmatprep.subr.mxu0 0.0
    %616 = vmatpush2.msra.mxu0 0.0
    %617 = vmatprep.subr.mxu0 0.0
    %618 = vmatpush2.msra.mxu0 0.0
    %619 = vmatprep.subr.mxu0 0.0
    %620 = vmatpush2.msra.mxu0 0.0
    %621 = vmatprep.subr.mxu0 0.0
    %622 = vmatpush2.msra.mxu0 0.0
    %623 = vmatprep.subr.mxu0 0.0
    %624 = vmatpush2.msra.mxu0 0.0
    %625 = vmatprep.subr.mxu0 0.0
    %626 = vmatpush2.msra.mxu0 0.0
    %627 = vmatprep.subr.mxu0 0.0
    %628 = vmatpush2.msra.mxu0 0.0
    %629 = vmatprep.subr.mxu0 0.0
    %630 = vmatpush2.msra.mxu0 0.0
    %631 = vmatprep.subr.mxu0 0.0
    %632 = vmatpush2.msra.mxu0 0.0
    %633 = vmatprep.subr.mxu0 0.0
    %634 = vmatpush2.msra.mxu0 0.0
    %635 = vmatprep.subr.mxu0 0.0
    %636 = vmatpush2.msra.mxu0 0.0
    %637 = vmatprep.subr.mxu0 0.0
    %638 = vmatpush2.msra.mxu0 0.0
    %639 = vmatprep.subr.mxu0 0.0
    %640 = vmatpush2.msra.mxu0 0.0
    %641 = vmatprep.subr.mxu0 0.0
    %642 = vmatpush2.msra.mxu0 0.0
    %643 = vmatprep.subr.mxu0 0.0
    %644 = vmatpush2.msra.mxu0 0.0
    %645 = vmatprep.mubr.f32.mxu0 0.0
    %646 = vmatmul.mubr.f32.gmra.mxu0 %v577
    %v647 = vpop.f32.mrf.mxu0
    %v648 = vadd.f32 %v53, %v647
    %v649 = vpop.f32.mrf.mxu0
    %650 = vmatprep.mubr.f32.mxu0 0.0
    %651 = vmatmul.mubr.f32.gmra.mxu0 %v579
    %v652 = vpop.f32.mrf.mxu0
    %v653 = vadd.f32 %v53, %v652
    %v654 = vpop.f32.mrf.mxu0
    %655 = vdwg.mxu0
    %v656 = vmax.f32 %v648, 0.0
    %v657 = vmax.f32 %v653, 0.0
    %v658 = vld [vmem:[#allocation2] sm:$0xff]
    %v659 = vld [vmem:[#allocation2 + $0x8] sm:$0xff]
    %660 = vset.pattern.permute.xlu0 5
    %661 = vperm.xlu0 %660, %v33
    %v662 = vpop.permute.xlu0 %661
    %664 = vset.pattern.permute.xlu0 5
    %665 = vperm.xlu0 %664, %v34
    %v666 = vpop.permute.xlu0 %665
    %v668 = vmul.f32 %v656, %v662
    %v669 = vmul.f32 %v657, %v666
    %v670 = vadd.f32 %v658, %v668
    %v671 = vadd.f32 %v659, %v669
    %672 = vst.msk [vmem:[#allocation2] sm:$0xff] %vm44, %v670
    %673 = vst.msk [vmem:[#allocation2 + $0x8] sm:$0xff] %vm44, %v671
    %v674 = vld [vmem:[%s0 + $0x18] sm:$0xff]
    %v675 = vld [vmem:[%s0 + $0x38] sm:$0xff]
    %v677 = vsel %vm55, %v674, 0
    %v680 = vsel %vm55, %v675, 0
    %682 = vmatprep.subr.mxu0 0.0
    %683 = vmatpush1.msra.mxu0 0.0
    %684 = vmatprep.subr.mxu0 0.0
    %685 = vmatpush1.msra.mxu0 0.0
    %686 = vmatprep.subr.mxu0 0.0
    %687 = vmatpush1.msra.mxu0 0.0
    %688 = vmatprep.subr.mxu0 0.0
    %689 = vmatpush1.msra.mxu0 0.0
    %690 = vmatprep.subr.mxu0 0.0
    %691 = vmatpush1.msra.mxu0 0.0
    %692 = vmatprep.subr.mxu0 0.0
    %693 = vmatpush1.msra.mxu0 0.0
    %694 = vmatprep.subr.mxu0 0.0
    %695 = vmatpush1.msra.mxu0 0.0
    %696 = vmatprep.subr.mxu0 0.0
    %697 = vmatpush1.msra.mxu0 0.0
    %698 = vmatprep.subr.mxu0 0.0
    %699 = vmatpush1.msra.mxu0 %v42
    %700 = vmatprep.subr.mxu0 0.0
    %701 = vmatpush1.msra.mxu0 %v41
    %702 = vmatprep.subr.mxu0 0.0
    %703 = vmatpush1.msra.mxu0 %v40
    %704 = vmatprep.subr.mxu0 0.0
    %705 = vmatpush1.msra.mxu0 %v39
    %706 = vmatprep.subr.mxu0 0.0
    %707 = vmatpush1.msra.mxu0 %v38
    %708 = vmatprep.subr.mxu0 0.0
    %709 = vmatpush1.msra.mxu0 %v37
    %710 = vmatprep.subr.mxu0 0.0
    %711 = vmatpush1.msra.mxu0 %v36
    %712 = vmatprep.subr.mxu0 0.0
    %713 = vmatpush1.msra.mxu0 %v35
    %714 = vmatprep.subr.mxu0 0.0
    %715 = vmatpush2.msra.mxu0 0.0
    %716 = vmatprep.subr.mxu0 0.0
    %717 = vmatpush2.msra.mxu0 0.0
    %718 = vmatprep.subr.mxu0 0.0
    %719 = vmatpush2.msra.mxu0 0.0
    %720 = vmatprep.subr.mxu0 0.0
    %721 = vmatpush2.msra.mxu0 0.0
    %722 = vmatprep.subr.mxu0 0.0
    %723 = vmatpush2.msra.mxu0 0.0
    %724 = vmatprep.subr.mxu0 0.0
    %725 = vmatpush2.msra.mxu0 0.0
    %726 = vmatprep.subr.mxu0 0.0
    %727 = vmatpush2.msra.mxu0 0.0
    %728 = vmatprep.subr.mxu0 0.0
    %729 = vmatpush2.msra.mxu0 0.0
    %730 = vmatprep.subr.mxu0 0.0
    %731 = vmatpush2.msra.mxu0 0.0
    %732 = vmatprep.subr.mxu0 0.0
    %733 = vmatpush2.msra.mxu0 0.0
    %734 = vmatprep.subr.mxu0 0.0
    %735 = vmatpush2.msra.mxu0 0.0
    %736 = vmatprep.subr.mxu0 0.0
    %737 = vmatpush2.msra.mxu0 0.0
    %738 = vmatprep.subr.mxu0 0.0
    %739 = vmatpush2.msra.mxu0 0.0
    %740 = vmatprep.subr.mxu0 0.0
    %741 = vmatpush2.msra.mxu0 0.0
    %742 = vmatprep.subr.mxu0 0.0
    %743 = vmatpush2.msra.mxu0 0.0
    %744 = vmatprep.subr.mxu0 0.0
    %745 = vmatpush2.msra.mxu0 0.0
    %746 = vmatprep.mubr.f32.mxu0 0.0
    %747 = vmatmul.mubr.f32.gmra.mxu0 %v677
    %v748 = vpop.f32.mrf.mxu0
    %v749 = vadd.f32 %v53, %v748
    %v750 = vpop.f32.mrf.mxu0
    %751 = vmatprep.mubr.f32.mxu0 0.0
    %752 = vmatmul.mubr.f32.gmra.mxu0 %v680
    %v753 = vpop.f32.mrf.mxu0
    %v754 = vadd.f32 %v53, %v753
    %v755 = vpop.f32.mrf.mxu0
    %756 = vdwg.mxu0
    %v757 = vmax.f32 %v749, 0.0
    %v758 = vmax.f32 %v754, 0.0
    %v759 = vld [vmem:[#allocation2] sm:$0xff]
    %v760 = vld [vmem:[#allocation2 + $0x8] sm:$0xff]
    %761 = vset.pattern.permute.xlu0 6
    %762 = vperm.xlu0 %761, %v33
    %v763 = vpop.permute.xlu0 %762
    %765 = vset.pattern.permute.xlu0 6
    %766 = vperm.xlu0 %765, %v34
    %v767 = vpop.permute.xlu0 %766
    %v769 = vmul.f32 %v757, %v763
    %v770 = vmul.f32 %v758, %v767
    %v771 = vadd.f32 %v759, %v769
    %v772 = vadd.f32 %v760, %v770
    %773 = vst.msk [vmem:[#allocation2] sm:$0xff] %vm44, %v771
    %774 = vst.msk [vmem:[#allocation2 + $0x8] sm:$0xff] %vm44, %v772
    %v775 = vld [vmem:[%s0 + $0x18] sm:$0xff]
    %v776 = vld [vmem:[%s0 + $0x38] sm:$0xff]
    %779 = vrot.lane.b32.xlu0 %v775, 64
    %v780 = vpop.permute.xlu0 %779
    %781 = vrot.lane.b32.xlu0 %v776, 64
    %v782 = vpop.permute.xlu0 %781
    %v783 = vsel %vm55, %v780, 0
    %v785 = vsel %vm55, %v782, 0
    %787 = vmatprep.subr.mxu0 0.0
    %788 = vmatpush1.msra.mxu0 0.0
    %789 = vmatprep.subr.mxu0 0.0
    %790 = vmatpush1.msra.mxu0 0.0
    %791 = vmatprep.subr.mxu0 0.0
    %792 = vmatpush1.msra.mxu0 0.0
    %793 = vmatprep.subr.mxu0 0.0
    %794 = vmatpush1.msra.mxu0 0.0
    %795 = vmatprep.subr.mxu0 0.0
    %796 = vmatpush1.msra.mxu0 0.0
    %797 = vmatprep.subr.mxu0 0.0
    %798 = vmatpush1.msra.mxu0 0.0
    %799 = vmatprep.subr.mxu0 0.0
    %800 = vmatpush1.msra.mxu0 0.0
    %801 = vmatprep.subr.mxu0 0.0
    %802 = vmatpush1.msra.mxu0 0.0
    %803 = vmatprep.subr.mxu0 0.0
    %804 = vmatpush1.msra.mxu0 %v42
    %805 = vmatprep.subr.mxu0 0.0
    %806 = vmatpush1.msra.mxu0 %v41
    %807 = vmatprep.subr.mxu0 0.0
    %808 = vmatpush1.msra.mxu0 %v40
    %809 = vmatprep.subr.mxu0 0.0
    %810 = vmatpush1.msra.mxu0 %v39
    %811 = vmatprep.subr.mxu0 0.0
    %812 = vmatpush1.msra.mxu0 %v38
    %813 = vmatprep.subr.mxu0 0.0
    %814 = vmatpush1.msra.mxu0 %v37
    %815 = vmatprep.subr.mxu0 0.0
    %816 = vmatpush1.msra.mxu0 %v36
    %817 = vmatprep.subr.mxu0 0.0
    %818 = vmatpush1.msra.mxu0 %v35
    %819 = vmatprep.subr.mxu0 0.0
    %820 = vmatpush2.msra.mxu0 0.0
    %821 = vmatprep.subr.mxu0 0.0
    %822 = vmatpush2.msra.mxu0 0.0
    %823 = vmatprep.subr.mxu0 0.0
    %824 = vmatpush2.msra.mxu0 0.0
    %825 = vmatprep.subr.mxu0 0.0
    %826 = vmatpush2.msra.mxu0 0.0
    %827 = vmatprep.subr.mxu0 0.0
    %828 = vmatpush2.msra.mxu0 0.0
    %829 = vmatprep.subr.mxu0 0.0
    %830 = vmatpush2.msra.mxu0 0.0
    %831 = vmatprep.subr.mxu0 0.0
    %832 = vmatpush2.msra.mxu0 0.0
    %833 = vmatprep.subr.mxu0 0.0
    %834 = vmatpush2.msra.mxu0 0.0
    %835 = vmatprep.subr.mxu0 0.0
    %836 = vmatpush2.msra.mxu0 0.0
    %837 = vmatprep.subr.mxu0 0.0
    %838 = vmatpush2.msra.mxu0 0.0
    %839 = vmatprep.subr.mxu0 0.0
    %840 = vmatpush2.msra.mxu0 0.0
    %841 = vmatprep.subr.mxu0 0.0
    %842 = vmatpush2.msra.mxu0 0.0
    %843 = vmatprep.subr.mxu0 0.0
    %844 = vmatpush2.msra.mxu0 0.0
    %845 = vmatprep.subr.mxu0 0.0
    %846 = vmatpush2.msra.mxu0 0.0
    %847 = vmatprep.subr.mxu0 0.0
    %848 = vmatpush2.msra.mxu0 0.0
    %849 = vmatprep.subr.mxu0 0.0
    %850 = vmatpush2.msra.mxu0 0.0
    %851 = vmatprep.mubr.f32.mxu0 0.0
    %852 = vmatmul.mubr.f32.gmra.mxu0 %v783
    %v853 = vpop.f32.mrf.mxu0
    %v854 = vadd.f32 %v53, %v853
    %v855 = vpop.f32.mrf.mxu0
    %856 = vmatprep.mubr.f32.mxu0 0.0
    %857 = vmatmul.mubr.f32.gmra.mxu0 %v785
    %v858 = vpop.f32.mrf.mxu0
    %v859 = vadd.f32 %v53, %v858
    %v860 = vpop.f32.mrf.mxu0
    %861 = vdwg.mxu0
    %v862 = vmax.f32 %v854, 0.0
    %v863 = vmax.f32 %v859, 0.0
    %v864 = vld [vmem:[#allocation2] sm:$0xff]
    %v865 = vld [vmem:[#allocation2 + $0x8] sm:$0xff]
    %866 = vset.pattern.permute.xlu0 7
    %867 = vperm.xlu0 %866, %v33
    %v868 = vpop.permute.xlu0 %867
    %870 = vset.pattern.permute.xlu0 7
    %871 = vperm.xlu0 %870, %v34
    %v872 = vpop.permute.xlu0 %871
    %v874 = vmul.f32 %v862, %v868
    %v875 = vmul.f32 %v863, %v872
    %v876 = vadd.f32 %v864, %v874
    %v877 = vadd.f32 %v865, %v875
    %878 = vst.msk [vmem:[#allocation2] sm:$0xff] %vm44, %v876
    %879 = vst.msk [vmem:[#allocation2 + $0x8] sm:$0xff] %vm44, %v877
    %vm880 = vcmask 64512
    %v881 = vsel %vm880, %v33, 0.0
    %882 = vadd.xlane.f32.xlu0 %v881
    %v883 = vpop.xlane.xlu0 %882
    %v884 = vsel %vm880, %v34, 0.0
    %885 = vadd.xlane.f32.xlu0 %v884
    %v886 = vpop.xlane.xlu0 %885
    %v887 = vld [vmem:[#allocation2] sm:$0xff]
    %v888 = vld [vmem:[#allocation2 + $0x8] sm:$0xff]
    %v889 = vld [vmem:[%s5] sm:$0xff]
    %v890 = vld [vmem:[%s5 + $0x8] sm:$0xff]
    %v891 = vld [vmem:[%s5 + $0x10] sm:$0xff]
    %v892 = vld [vmem:[%s5 + $0x18] sm:$0xff]
    %v893 = vld [vmem:[%s6] sm:$0x1]
    %v895 = vlaneseq
    %v896 = vshrl.u32 %v895, 7
    %v897 = vsub.s32 0, %v896
    %v898 = vrot.slane %v893, %v897
    %v900 = vmul.f32 %v898, %v883
    %v901 = vmul.f32 %v898, %v886
    %v903 = vsel %vm44, %v887, 0
    %v906 = vsel %vm44, %v888, 0
    %908 = vmatprep.subr.mxu0 0.0
    %909 = vmatpush1.msra.mxu0 0.0
    %910 = vmatprep.subr.mxu0 0.0
    %911 = vmatpush1.msra.mxu0 0.0
    %912 = vmatprep.subr.mxu0 0.0
    %913 = vmatpush1.msra.mxu0 0.0
    %914 = vmatprep.subr.mxu0 0.0
    %915 = vmatpush1.msra.mxu0 0.0
    %916 = vmatprep.subr.mxu0 0.0
    %917 = vmatpush1.msra.mxu0 0.0
    %918 = vmatprep.subr.mxu0 0.0
    %919 = vmatpush1.msra.mxu0 0.0
    %920 = vmatprep.subr.mxu0 0.0
    %921 = vmatpush1.msra.mxu0 0.0
    %922 = vmatprep.subr.mxu0 0.0
    %923 = vmatpush1.msra.mxu0 0.0
    %924 = vmatprep.subr.mxu0 0.0
    %925 = vmatpush1.msra.mxu0 0.0
    %926 = vmatprep.subr.mxu0 0.0
    %927 = vmatpush1.msra.mxu0 0.0
    %928 = vmatprep.subr.mxu0 0.0
    %929 = vmatpush1.msra.mxu0 0.0
    %930 = vmatprep.subr.mxu0 0.0
    %931 = vmatpush1.msra.mxu0 0.0
    %932 = vmatprep.subr.mxu0 0.0
    %933 = vmatpush1.msra.mxu0 %v892
    %934 = vmatprep.subr.mxu0 0.0
    %935 = vmatpush1.msra.mxu0 %v891
    %936 = vmatprep.subr.mxu0 0.0
    %937 = vmatpush1.msra.mxu0 %v890
    %938 = vmatprep.subr.mxu0 0.0
    %939 = vmatpush1.msra.mxu0 %v889
    %940 = vmatprep.subr.mxu0 0.0
    %941 = vmatpush2.msra.mxu0 0.0
    %942 = vmatprep.subr.mxu0 0.0
    %943 = vmatpush2.msra.mxu0 0.0
    %944 = vmatprep.subr.mxu0 0.0
    %945 = vmatpush2.msra.mxu0 0.0
    %946 = vmatprep.subr.mxu0 0.0
    %947 = vmatpush2.msra.mxu0 0.0
    %948 = vmatprep.subr.mxu0 0.0
    %949 = vmatpush2.msra.mxu0 0.0
    %950 = vmatprep.subr.mxu0 0.0
    %951 = vmatpush2.msra.mxu0 0.0
    %952 = vmatprep.subr.mxu0 0.0
    %953 = vmatpush2.msra.mxu0 0.0
    %954 = vmatprep.subr.mxu0 0.0
    %955 = vmatpush2.msra.mxu0 0.0
    %956 = vmatprep.subr.mxu0 0.0
    %957 = vmatpush2.msra.mxu0 0.0
    %958 = vmatprep.subr.mxu0 0.0
    %959 = vmatpush2.msra.mxu0 0.0
    %960 = vmatprep.subr.mxu0 0.0
    %961 = vmatpush2.msra.mxu0 0.0
    %962 = vmatprep.subr.mxu0 0.0
    %963 = vmatpush2.msra.mxu0 0.0
    %964 = vmatprep.subr.mxu0 0.0
    %965 = vmatpush2.msra.mxu0 0.0
    %966 = vmatprep.subr.mxu0 0.0
    %967 = vmatpush2.msra.mxu0 0.0
    %968 = vmatprep.subr.mxu0 0.0
    %969 = vmatpush2.msra.mxu0 0.0
    %970 = vmatprep.subr.mxu0 0.0
    %971 = vmatpush2.msra.mxu0 0.0
    %972 = vmatprep.mubr.f32.mxu0 0.0
    %973 = vmatmul.mubr.f32.gmra.mxu0 %v903
    %v974 = vpop.f32.mrf.mxu0
    %v975 = vadd.f32 %v900, %v974
    %v976 = vpop.f32.mrf.mxu0
    %977 = vmatprep.mubr.f32.mxu0 0.0
    %978 = vmatmul.mubr.f32.gmra.mxu0 %v906
    %v979 = vpop.f32.mrf.mxu0
    %v980 = vadd.f32 %v901, %v979
    %v981 = vpop.f32.mrf.mxu0
    %982 = vdwg.mxu0
    %v983 = vld [vmem:[%s2] sm:$0xff]
    %v984 = vld [vmem:[%s2 + $0x8] sm:$0xff]
    %v985 = vadd.f32 %v983, %v975
    %v986 = vadd.f32 %v984, %v980
    %v987 = vsel %vm44, %v985, 0.0
    %988 = vadd.xlane.f32.xlu0 %v987
    %v989 = vpop.xlane.xlu0 %988
    %v990 = vsel %vm44, %v986, 0.0
    %991 = vadd.xlane.f32.xlu0 %v990
    %v992 = vpop.xlane.xlu0 %991
    %v993 = vrcp.pop 32.0
    %v994 = vmul.f32 %v989, %v993
    %v995 = vmul.f32 %v992, %v993
    %v996 = vsub.f32 %v985, %v994
    %v997 = vsub.f32 %v986, %v995
    %v998 = vmul.f32 %v996, %v996
    %v999 = vmul.f32 %v997, %v997
    %v1000 = vsel %vm44, %v998, 0.0
    %1001 = vadd.xlane.f32.xlu0 %v1000
    %v1002 = vpop.xlane.xlu0 %1001
    %v1003 = vsel %vm44, %v999, 0.0
    %1004 = vadd.xlane.f32.xlu0 %v1003
    %v1005 = vpop.xlane.xlu0 %1004
    %v1006 = vmul.f32 %v1002, %v993
    %v1007 = vmul.f32 %v1005, %v993
    %v1008 = vadd.f32 %v1006, 1e-05
    %v1009 = vadd.f32 %v1007, 1e-05
    %v1010 = vrsqrt.pop %v1008
    %v1011 = vrsqrt.pop %v1009
    %v1012 = vmul.f32 %v996, %v1010
    %v1013 = vmul.f32 %v997, %v1011
    %v1014 = vld [vmem:[%s7] sm:$0x1]
    %v1016 = vlaneseq
    %v1017 = vshrl.u32 %v1016, 7
    %v1018 = vsub.s32 0, %v1017
    %v1019 = vrot.slane %v1014, %v1018
    %v1021 = vmul.f32 %v1012, %v1019
    %v1022 = vmul.f32 %v1013, %v1019
    %v1023 = vld [vmem:[%s8] sm:$0x1]
    %v1025 = vlaneseq
    %v1026 = vshrl.u32 %v1025, 7
    %v1027 = vsub.s32 0, %v1026
    %v1028 = vrot.slane %v1023, %v1027
    %v1030 = vadd.f32 %v1021, %v1028
    %v1031 = vadd.f32 %v1022, %v1028
    %1032 = vst.msk [vmem:[#allocation3] sm:$0xff] %vm44, %v1030
    %1033 = vst.msk [vmem:[#allocation3 + $0x8] sm:$0xff] %vm44, %v1031
    // Predicated region
    $region38: #{refinement_forward.1} parent=1 // pred_check
      _
    $region39: #{refinement_forward.1} parent=1 // pred_check_branch
      %1035 = sbr.rel (0) target = $region41
    $region40: #{refinement_forward.1} parent=1 // pred_region
      %s1037 = ssub.s32 256, 256
      %1038 = vsyncadd [#allocation4], %s1037
      %s1039 = sshll.u32 [#allocation3], 4
      %s1040 = int_to_ptr.vmem [resolvable:$true] %s1039
      %1045 = dma.vmem_to_hbm [thread:$0]  %s1040, 256, %s9, [#allocation4], 128, 128, 8
    $region41: #{refinement_forward.1} parent=1 // pred_fallthru
      _
    // Predicated region
    $region42: #{refinement_forward.1} parent=1 // pred_check
      _
    $region43: #{refinement_forward.1} parent=1 // pred_check_branch
      %1047 = sbr.rel (0) target = $region45
    $region44: #{refinement_forward.1} parent=1 // pred_region
      %1048 = dma.done [#allocation4], 256
    $region45: #{refinement_forward.1} parent=1 // pred_fallthru
      _
    %1049 = vsyncpa [#allocation4], 1

</llo_original>
